<compile_context>
chip_gen: v7x
topology: tpu7x:2x2x1
jax: 0.10.0
libtpu: 0.0.40
codegen_flags: <defaults>
</compile_context>

<pallas_src>
import functools

import numpy as np

import jax
import jax.numpy as jnp
from jax.experimental import pallas as pl
from jax.experimental.pallas import tpu as pltpu

_LANES = 128
_BLOCK_ROWS_TARGET = 2048  # 2048 * 128 * 4 B = 1 MiB per f32 block


def mlp_kernel(params_ref, x_ref, o_ref, *, dh, n_pos):
    """params_ref: SMEM f32[2*dh + 1] = [a_0..a_{dh-1}, c_0..c_{dh-1}, b2],
    units ordered so the first `n_pos` (w2 >= 0) are added, the rest subtracted.

    x_ref / o_ref: (block_rows, 128) f32 VMEM tiles.
    """
    # Pull every scalar out of SMEM before the vector loop so the sld stream
    # is not interleaved with VALU issue.
    a = [params_ref[j] for j in range(dh)]
    c = [params_ref[dh + j] for j in range(dh)]
    b2 = params_ref[2 * dh]

    x = x_ref[...]
    acc = jnp.full_like(x, b2)               # fold b2 into the accumulator init
    # Statically unrolled VPU loop: mul, add, max, add/sub per hidden unit.
    for j in range(dh):
        t = jnp.maximum(a[j] * x + c[j], 0.0)
        acc = acc + t if j < n_pos else acc - t
    o_ref[...] = acc


def prepare_params(w1, b1, w2, b2):
    """One-time packing of the 61 Net parameters (hoisted out of the call path).

    Returns (params, dh, n_pos) with params = [a_0.., c_0.., b2] where
    a_j = |w2_j| * w1_j, c_j = |w2_j| * b1_j, units sorted so the n_pos
    non-negative-w2 units come first.
    """
    w1 = jnp.asarray(w1, jnp.float32).reshape(-1)
    b1 = jnp.asarray(b1, jnp.float32).reshape(-1)
    w2 = jnp.asarray(w2, jnp.float32).reshape(-1)
    b2 = jnp.asarray(b2, jnp.float32).reshape(-1)
    dh = w1.shape[0]

    # Weights are fixed -> the sign partition is a concrete host-side step.
    w2_host = np.asarray(jax.device_get(w2))
    neg = w2_host < 0.0
    order = jnp.asarray(np.argsort(neg, kind="stable"), jnp.int32)  # positives first
    n_pos = int((~neg).sum())

    absw2 = jnp.abs(w2)[order]
    a = absw2 * w1[order]
    c = absw2 * b1[order]
    params = jnp.concatenate([a, c, b2])
    return params, dh, n_pos


@functools.partial(jax.jit, static_argnames=("dh", "n_pos"))
def net_forward_packed(x, params, *, dh, n_pos):
    """x: (N, 1) float32. Returns (N, 1) float32 == relu(x@w1+b1)@w2 + b2."""
    n = x.shape[0]
    rows = pl.cdiv(n, _LANES)
    n_pad = rows * _LANES

    x_flat = x.reshape(n)                          # free view of (N, 1)
    if n_pad != n:
        x_flat = jnp.pad(x_flat, (0, n_pad - n))   # only the ragged lane tail
    x_slab = x_flat.reshape(rows, _LANES)          # lane-dense slab

    block_rows = min(_BLOCK_ROWS_TARGET, rows)     # multiple of 8, or == full dim
    grid = (pl.cdiv(rows, block_rows),)

    y_slab = pl.pallas_call(
        functools.partial(mlp_kernel, dh=dh, n_pos=n_pos),
        out_shape=jax.ShapeDtypeStruct((rows, _LANES), jnp.float32),
        grid=grid,
        in_specs=[
            # Constant block index across the grid -> copied into SMEM once.
            pl.BlockSpec(memory_space=pltpu.MemorySpace.SMEM),
            pl.BlockSpec((block_rows, _LANES), lambda i: (i, 0)),
        ],
        out_specs=pl.BlockSpec((block_rows, _LANES), lambda i: (i, 0)),
        compiler_params=pltpu.CompilerParams(
            dimension_semantics=("parallel",)),
    )(params, x_slab)

    # Back to the PyTorch (N, 1) layout; padded tail rows are sliced off here.
    return y_slab.reshape(n_pad, 1)[:n]


def net_forward(x, w1, b1, w2, b2):
    """Convenience one-shot wrapper (packing + jitted kernel call)."""
    params, dh, n_pos = prepare_params(w1, b1, w2, b2)
    return net_forward_packed(x, params, dh=dh, n_pos=n_pos)


def init_params(key, din=1, dh=20, dout=1):
    """Deterministic init mimicking PyTorch nn.Linear default U(-1/sqrt(fan_in), ...)."""
    k1, k2, k3, k4 = jax.random.split(key, 4)
    bound1 = 1.0 / jnp.sqrt(jnp.float32(din))
    bound2 = 1.0 / jnp.sqrt(jnp.float32(dh))
    w1 = jax.random.uniform(k1, (din, dh), jnp.float32, -bound1, bound1)
    b1 = jax.random.uniform(k2, (1, dh), jnp.float32, -bound1, bound1)
    w2 = jax.random.uniform(k3, (dh, dout), jnp.float32, -bound2, bound2)
    b2 = jax.random.uniform(k4, (1, dout), jnp.float32, -bound2, bound2)
    return w1, b1, w2, b2


if __name__ == "__main__":
    key = jax.random.PRNGKey(0)
    # Same input as the original script: x = unsqueeze(linspace(-1, 1, 1000), dim=1)
    x = jnp.linspace(-1.0, 1.0, 1000, dtype=jnp.float32).reshape(1000, 1)

    w1, b1, w2, b2 = init_params(key)

    # One-time packing (hoisted), then the jitted kernel call.
    params, dh, n_pos = prepare_params(w1, b1, w2, b2)
    y = net_forward_packed(x, params, dh=dh, n_pos=n_pos)
    y = jax.block_until_ready(y)

    # Reference check in plain JAX.
    y_ref = jnp.maximum(x @ w1 + b1, 0.0) @ w2 + b2
    assert y.shape == (1000, 1)
    assert jnp.allclose(y, y_ref, atol=1e-5, rtol=1e-5)

    print("KERNEL_OK")
</pallas_src>

<mosaic_0001>
module attributes {stable_mosaic.version = 11 : i64} {
  func.func @mlp_kernel(%arg0: i32, %arg1: memref<41xf32, #tpu.memory_space<smem>>, %arg2: memref<8x128xf32, #tpu.memory_space<vmem>>, %arg3: memref<8x128xf32, #tpu.memory_space<vmem>>) attributes {dimension_semantics = [#tpu.dimension_semantics<parallel>], iteration_bounds = array<i64: 1>, scalar_prefetch = 0 : i64, scratch_operands = 0 : i64, tpu.core_type = #tpu.core_type<tc>, window_params = [{transform_indices = @transform_0, window_bounds = array<i64: 41>}, {transform_indices = @transform_1, window_bounds = array<i64: 8, 128>}, {transform_indices = @transform_2, window_bounds = array<i64: 8, 128>}]} {
    %c0 = arith.constant 0 : index
    %0 = memref.load %arg1[%c0] : memref<41xf32, #tpu.memory_space<smem>>
    %c1 = arith.constant 1 : index
    %1 = memref.load %arg1[%c1] : memref<41xf32, #tpu.memory_space<smem>>
    %c2 = arith.constant 2 : index
    %2 = memref.load %arg1[%c2] : memref<41xf32, #tpu.memory_space<smem>>
    %c3 = arith.constant 3 : index
    %3 = memref.load %arg1[%c3] : memref<41xf32, #tpu.memory_space<smem>>
    %c4 = arith.constant 4 : index
    %4 = memref.load %arg1[%c4] : memref<41xf32, #tpu.memory_space<smem>>
    %c5 = arith.constant 5 : index
    %5 = memref.load %arg1[%c5] : memref<41xf32, #tpu.memory_space<smem>>
    %c6 = arith.constant 6 : index
    %6 = memref.load %arg1[%c6] : memref<41xf32, #tpu.memory_space<smem>>
    %c7 = arith.constant 7 : index
    %7 = memref.load %arg1[%c7] : memref<41xf32, #tpu.memory_space<smem>>
    %c8 = arith.constant 8 : index
    %8 = memref.load %arg1[%c8] : memref<41xf32, #tpu.memory_space<smem>>
    %c9 = arith.constant 9 : index
    %9 = memref.load %arg1[%c9] : memref<41xf32, #tpu.memory_space<smem>>
    %c10 = arith.constant 10 : index
    %10 = memref.load %arg1[%c10] : memref<41xf32, #tpu.memory_space<smem>>
    %c11 = arith.constant 11 : index
    %11 = memref.load %arg1[%c11] : memref<41xf32, #tpu.memory_space<smem>>
    %c12 = arith.constant 12 : index
    %12 = memref.load %arg1[%c12] : memref<41xf32, #tpu.memory_space<smem>>
    %c13 = arith.constant 13 : index
    %13 = memref.load %arg1[%c13] : memref<41xf32, #tpu.memory_space<smem>>
    %c14 = arith.constant 14 : index
    %14 = memref.load %arg1[%c14] : memref<41xf32, #tpu.memory_space<smem>>
    %c15 = arith.constant 15 : index
    %15 = memref.load %arg1[%c15] : memref<41xf32, #tpu.memory_space<smem>>
    %c16 = arith.constant 16 : index
    %16 = memref.load %arg1[%c16] : memref<41xf32, #tpu.memory_space<smem>>
    %c17 = arith.constant 17 : index
    %17 = memref.load %arg1[%c17] : memref<41xf32, #tpu.memory_space<smem>>
    %c18 = arith.constant 18 : index
    %18 = memref.load %arg1[%c18] : memref<41xf32, #tpu.memory_space<smem>>
    %c19 = arith.constant 19 : index
    %19 = memref.load %arg1[%c19] : memref<41xf32, #tpu.memory_space<smem>>
    %c20 = arith.constant 20 : index
    %20 = memref.load %arg1[%c20] : memref<41xf32, #tpu.memory_space<smem>>
    %c21 = arith.constant 21 : index
    %21 = memref.load %arg1[%c21] : memref<41xf32, #tpu.memory_space<smem>>
    %c22 = arith.constant 22 : index
    %22 = memref.load %arg1[%c22] : memref<41xf32, #tpu.memory_space<smem>>
    %c23 = arith.constant 23 : index
    %23 = memref.load %arg1[%c23] : memref<41xf32, #tpu.memory_space<smem>>
    %c24 = arith.constant 24 : index
    %24 = memref.load %arg1[%c24] : memref<41xf32, #tpu.memory_space<smem>>
    %c25 = arith.constant 25 : index
    %25 = memref.load %arg1[%c25] : memref<41xf32, #tpu.memory_space<smem>>
    %c26 = arith.constant 26 : index
    %26 = memref.load %arg1[%c26] : memref<41xf32, #tpu.memory_space<smem>>
    %c27 = arith.constant 27 : index
    %27 = memref.load %arg1[%c27] : memref<41xf32, #tpu.memory_space<smem>>
    %c28 = arith.constant 28 : index
    %28 = memref.load %arg1[%c28] : memref<41xf32, #tpu.memory_space<smem>>
    %c29 = arith.constant 29 : index
    %29 = memref.load %arg1[%c29] : memref<41xf32, #tpu.memory_space<smem>>
    %c30 = arith.constant 30 : index
    %30 = memref.load %arg1[%c30] : memref<41xf32, #tpu.memory_space<smem>>
    %c31 = arith.constant 31 : index
    %31 = memref.load %arg1[%c31] : memref<41xf32, #tpu.memory_space<smem>>
    %c32 = arith.constant 32 : index
    %32 = memref.load %arg1[%c32] : memref<41xf32, #tpu.memory_space<smem>>
    %c33 = arith.constant 33 : index
    %33 = memref.load %arg1[%c33] : memref<41xf32, #tpu.memory_space<smem>>
    %c34 = arith.constant 34 : index
    %34 = memref.load %arg1[%c34] : memref<41xf32, #tpu.memory_space<smem>>
    %c35 = arith.constant 35 : index
    %35 = memref.load %arg1[%c35] : memref<41xf32, #tpu.memory_space<smem>>
    %c36 = arith.constant 36 : index
    %36 = memref.load %arg1[%c36] : memref<41xf32, #tpu.memory_space<smem>>
    %c37 = arith.constant 37 : index
    %37 = memref.load %arg1[%c37] : memref<41xf32, #tpu.memory_space<smem>>
    %c38 = arith.constant 38 : index
    %38 = memref.load %arg1[%c38] : memref<41xf32, #tpu.memory_space<smem>>
    %c39 = arith.constant 39 : index
    %39 = memref.load %arg1[%c39] : memref<41xf32, #tpu.memory_space<smem>>
    %c40 = arith.constant 40 : index
    %40 = memref.load %arg1[%c40] : memref<41xf32, #tpu.memory_space<smem>>
    %c0_0 = arith.constant 0 : index
    %c0_1 = arith.constant 0 : index
    %41 = vector.load %arg2[%c0_0, %c0_1] : memref<8x128xf32, #tpu.memory_space<vmem>>, vector<8x128xf32>
    %42 = vector.broadcast %40 : f32 to vector<8x128xf32>
    %43 = vector.broadcast %0 : f32 to vector<8x128xf32>
    %44 = arith.mulf %43, %41 : vector<8x128xf32>
    %45 = vector.broadcast %20 : f32 to vector<8x128xf32>
    %46 = arith.addf %44, %45 : vector<8x128xf32>
    %cst = arith.constant 0.000000e+00 : f32
    %47 = vector.broadcast %cst : f32 to vector<8x128xf32>
    %48 = arith.maximumf %46, %47 : vector<8x128xf32>
    %49 = arith.addf %42, %48 : vector<8x128xf32>
    %50 = vector.broadcast %1 : f32 to vector<8x128xf32>
    %51 = arith.mulf %50, %41 : vector<8x128xf32>
    %52 = vector.broadcast %21 : f32 to vector<8x128xf32>
    %53 = arith.addf %51, %52 : vector<8x128xf32>
    %cst_2 = arith.constant 0.000000e+00 : f32
    %54 = vector.broadcast %cst_2 : f32 to vector<8x128xf32>
    %55 = arith.maximumf %53, %54 : vector<8x128xf32>
    %56 = arith.addf %49, %55 : vector<8x128xf32>
    %57 = vector.broadcast %2 : f32 to vector<8x128xf32>
    %58 = arith.mulf %57, %41 : vector<8x128xf32>
    %59 = vector.broadcast %22 : f32 to vector<8x128xf32>
    %60 = arith.addf %58, %59 : vector<8x128xf32>
    %cst_3 = arith.constant 0.000000e+00 : f32
    %61 = vector.broadcast %cst_3 : f32 to vector<8x128xf32>
    %62 = arith.maximumf %60, %61 : vector<8x128xf32>
    %63 = arith.addf %56, %62 : vector<8x128xf32>
    %64 = vector.broadcast %3 : f32 to vector<8x128xf32>
    %65 = arith.mulf %64, %41 : vector<8x128xf32>
    %66 = vector.broadcast %23 : f32 to vector<8x128xf32>
    %67 = arith.addf %65, %66 : vector<8x128xf32>
    %cst_4 = arith.constant 0.000000e+00 : f32
    %68 = vector.broadcast %cst_4 : f32 to vector<8x128xf32>
    %69 = arith.maximumf %67, %68 : vector<8x128xf32>
    %70 = arith.addf %63, %69 : vector<8x128xf32>
    %71 = vector.broadcast %4 : f32 to vector<8x128xf32>
    %72 = arith.mulf %71, %41 : vector<8x128xf32>
    %73 = vector.broadcast %24 : f32 to vector<8x128xf32>
    %74 = arith.addf %72, %73 : vector<8x128xf32>
    %cst_5 = arith.constant 0.000000e+00 : f32
    %75 = vector.broadcast %cst_5 : f32 to vector<8x128xf32>
    %76 = arith.maximumf %74, %75 : vector<8x128xf32>
    %77 = arith.addf %70, %76 : vector<8x128xf32>
    %78 = vector.broadcast %5 : f32 to vector<8x128xf32>
    %79 = arith.mulf %78, %41 : vector<8x128xf32>
    %80 = vector.broadcast %25 : f32 to vector<8x128xf32>
    %81 = arith.addf %79, %80 : vector<8x128xf32>
    %cst_6 = arith.constant 0.000000e+00 : f32
    %82 = vector.broadcast %cst_6 : f32 to vector<8x128xf32>
    %83 = arith.maximumf %81, %82 : vector<8x128xf32>
    %84 = arith.addf %77, %83 : vector<8x128xf32>
    %85 = vector.broadcast %6 : f32 to vector<8x128xf32>
    %86 = arith.mulf %85, %41 : vector<8x128xf32>
    %87 = vector.broadcast %26 : f32 to vector<8x128xf32>
    %88 = arith.addf %86, %87 : vector<8x128xf32>
    %cst_7 = arith.constant 0.000000e+00 : f32
    %89 = vector.broadcast %cst_7 : f32 to vector<8x128xf32>
    %90 = arith.maximumf %88, %89 : vector<8x128xf32>
    %91 = arith.addf %84, %90 : vector<8x128xf32>
    %92 = vector.broadcast %7 : f32 to vector<8x128xf32>
    %93 = arith.mulf %92, %41 : vector<8x128xf32>
    %94 = vector.broadcast %27 : f32 to vector<8x128xf32>
    %95 = arith.addf %93, %94 : vector<8x128xf32>
    %cst_8 = arith.constant 0.000000e+00 : f32
    %96 = vector.broadcast %cst_8 : f32 to vector<8x128xf32>
    %97 = arith.maximumf %95, %96 : vector<8x128xf32>
    %98 = arith.addf %91, %97 : vector<8x128xf32>
    %99 = vector.broadcast %8 : f32 to vector<8x128xf32>
    %100 = arith.mulf %99, %41 : vector<8x128xf32>
    %101 = vector.broadcast %28 : f32 to vector<8x128xf32>
    %102 = arith.addf %100, %101 : vector<8x128xf32>
    %cst_9 = arith.constant 0.000000e+00 : f32
    %103 = vector.broadcast %cst_9 : f32 to vector<8x128xf32>
    %104 = arith.maximumf %102, %103 : vector<8x128xf32>
    %105 = arith.addf %98, %104 : vector<8x128xf32>
    %106 = vector.broadcast %9 : f32 to vector<8x128xf32>
    %107 = arith.mulf %106, %41 : vector<8x128xf32>
    %108 = vector.broadcast %29 : f32 to vector<8x128xf32>
    %109 = arith.addf %107, %108 : vector<8x128xf32>
    %cst_10 = arith.constant 0.000000e+00 : f32
    %110 = vector.broadcast %cst_10 : f32 to vector<8x128xf32>
    %111 = arith.maximumf %109, %110 : vector<8x128xf32>
    %112 = arith.addf %105, %111 : vector<8x128xf32>
    %113 = vector.broadcast %10 : f32 to vector<8x128xf32>
    %114 = arith.mulf %113, %41 : vector<8x128xf32>
    %115 = vector.broadcast %30 : f32 to vector<8x128xf32>
    %116 = arith.addf %114, %115 : vector<8x128xf32>
    %cst_11 = arith.constant 0.000000e+00 : f32
    %117 = vector.broadcast %cst_11 : f32 to vector<8x128xf32>
    %118 = arith.maximumf %116, %117 : vector<8x128xf32>
    %119 = arith.addf %112, %118 : vector<8x128xf32>
    %120 = vector.broadcast %11 : f32 to vector<8x128xf32>
    %121 = arith.mulf %120, %41 : vector<8x128xf32>
    %122 = vector.broadcast %31 : f32 to vector<8x128xf32>
    %123 = arith.addf %121, %122 : vector<8x128xf32>
    %cst_12 = arith.constant 0.000000e+00 : f32
    %124 = vector.broadcast %cst_12 : f32 to vector<8x128xf32>
    %125 = arith.maximumf %123, %124 : vector<8x128xf32>
    %126 = arith.subf %119, %125 : vector<8x128xf32>
    %127 = vector.broadcast %12 : f32 to vector<8x128xf32>
    %128 = arith.mulf %127, %41 : vector<8x128xf32>
    %129 = vector.broadcast %32 : f32 to vector<8x128xf32>
    %130 = arith.addf %128, %129 : vector<8x128xf32>
    %cst_13 = arith.constant 0.000000e+00 : f32
    %131 = vector.broadcast %cst_13 : f32 to vector<8x128xf32>
    %132 = arith.maximumf %130, %131 : vector<8x128xf32>
    %133 = arith.subf %126, %132 : vector<8x128xf32>
    %134 = vector.broadcast %13 : f32 to vector<8x128xf32>
    %135 = arith.mulf %134, %41 : vector<8x128xf32>
    %136 = vector.broadcast %33 : f32 to vector<8x128xf32>
    %137 = arith.addf %135, %136 : vector<8x128xf32>
    %cst_14 = arith.constant 0.000000e+00 : f32
    %138 = vector.broadcast %cst_14 : f32 to vector<8x128xf32>
    %139 = arith.maximumf %137, %138 : vector<8x128xf32>
    %140 = arith.subf %133, %139 : vector<8x128xf32>
    %141 = vector.broadcast %14 : f32 to vector<8x128xf32>
    %142 = arith.mulf %141, %41 : vector<8x128xf32>
    %143 = vector.broadcast %34 : f32 to vector<8x128xf32>
    %144 = arith.addf %142, %143 : vector<8x128xf32>
    %cst_15 = arith.constant 0.000000e+00 : f32
    %145 = vector.broadcast %cst_15 : f32 to vector<8x128xf32>
    %146 = arith.maximumf %144, %145 : vector<8x128xf32>
    %147 = arith.subf %140, %146 : vector<8x128xf32>
    %148 = vector.broadcast %15 : f32 to vector<8x128xf32>
    %149 = arith.mulf %148, %41 : vector<8x128xf32>
    %150 = vector.broadcast %35 : f32 to vector<8x128xf32>
    %151 = arith.addf %149, %150 : vector<8x128xf32>
    %cst_16 = arith.constant 0.000000e+00 : f32
    %152 = vector.broadcast %cst_16 : f32 to vector<8x128xf32>
    %153 = arith.maximumf %151, %152 : vector<8x128xf32>
    %154 = arith.subf %147, %153 : vector<8x128xf32>
    %155 = vector.broadcast %16 : f32 to vector<8x128xf32>
    %156 = arith.mulf %155, %41 : vector<8x128xf32>
    %157 = vector.broadcast %36 : f32 to vector<8x128xf32>
    %158 = arith.addf %156, %157 : vector<8x128xf32>
    %cst_17 = arith.constant 0.000000e+00 : f32
    %159 = vector.broadcast %cst_17 : f32 to vector<8x128xf32>
    %160 = arith.maximumf %158, %159 : vector<8x128xf32>
    %161 = arith.subf %154, %160 : vector<8x128xf32>
    %162 = vector.broadcast %17 : f32 to vector<8x128xf32>
    %163 = arith.mulf %162, %41 : vector<8x128xf32>
    %164 = vector.broadcast %37 : f32 to vector<8x128xf32>
    %165 = arith.addf %163, %164 : vector<8x128xf32>
    %cst_18 = arith.constant 0.000000e+00 : f32
    %166 = vector.broadcast %cst_18 : f32 to vector<8x128xf32>
    %167 = arith.maximumf %165, %166 : vector<8x128xf32>
    %168 = arith.subf %161, %167 : vector<8x128xf32>
    %169 = vector.broadcast %18 : f32 to vector<8x128xf32>
    %170 = arith.mulf %169, %41 : vector<8x128xf32>
    %171 = vector.broadcast %38 : f32 to vector<8x128xf32>
    %172 = arith.addf %170, %171 : vector<8x128xf32>
    %cst_19 = arith.constant 0.000000e+00 : f32
    %173 = vector.broadcast %cst_19 : f32 to vector<8x128xf32>
    %174 = arith.maximumf %172, %173 : vector<8x128xf32>
    %175 = arith.subf %168, %174 : vector<8x128xf32>
    %176 = vector.broadcast %19 : f32 to vector<8x128xf32>
    %177 = arith.mulf %176, %41 : vector<8x128xf32>
    %178 = vector.broadcast %39 : f32 to vector<8x128xf32>
    %179 = arith.addf %177, %178 : vector<8x128xf32>
    %cst_20 = arith.constant 0.000000e+00 : f32
    %180 = vector.broadcast %cst_20 : f32 to vector<8x128xf32>
    %181 = arith.maximumf %179, %180 : vector<8x128xf32>
    %182 = arith.subf %175, %181 : vector<8x128xf32>
    %c0_21 = arith.constant 0 : index
    %c0_22 = arith.constant 0 : index
    %183 = vector.load %arg3[%c0_21, %c0_22] : memref<8x128xf32, #tpu.memory_space<vmem>>, vector<8x128xf32>
    tpu.vector_store %arg3[%c0_21, %c0_22], %182 {strides = array<i32>} : memref<8x128xf32, #tpu.memory_space<vmem>>, vector<8x128xf32>,
    return
  }
  func.func @transform_0(%arg0: i32) -> i32 {
    %c0_i32 = arith.constant 0 : i32
    %c0_i32_0 = arith.constant 0 : i32
    return %c0_i32 : i32
  }
  func.func @transform_1(%arg0: i32) -> (i32, i32) {
    %c0_i32 = arith.constant 0 : i32
    %c0_i32_0 = arith.constant 0 : i32
    return %arg0, %c0_i32 : i32, i32
  }
  func.func @transform_2(%arg0: i32) -> (i32, i32) {
    %c0_i32 = arith.constant 0 : i32
    %c0_i32_0 = arith.constant 0 : i32
    return %arg0, %c0_i32 : i32, i32
  }
}

</mosaic_0001>

<llo_original>
// kernel: net_forward_packed.1
$region0: #{net_forward_packed.1}
  #allocation0 [shape = 'u32[]', space=smem, size = 0x4, offset = 0x4, fixed_abs, tag = 'smem constant byte address 0x4 - core index']
  #allocation1 [shape = 'u32[144,128]{1,0:T(1,128)}', space=vmem, size = 0x12000, scoped, tag = 'internal scratch']
  %s0 = inlined_call_operand.vmem [shape: f32[41], index: 0, kind: input, shape index: {}]
  %s1 = inlined_call_operand.vmem [shape: f32[8,128], index: 1, kind: input, shape index: {}]
  %s2 = inlined_call_operand.hbm [shape: f32[8,128], index: 2, kind: output, shape index: {}]
  %s3 = sld [smem:[#allocation0]]
  $region22: #{net_forward_packed.1} parent=0
    _
  %s5 = ssub.s32 1, %s3
  %s6 = scalar_select 0, %s5, %s3
  $region1: #{net_forward_packed.1} parent=0
    #allocation2 [shape = 'u8[512]{0}', space=smem, size = 0x200, scoped, tag = 'input window, operand 0, single buffered']
    #allocation3 [shape = 's32[1]{0}', space=sflag, size = 0x4, scoped, tag = 'scoped memory for net_forward_packed.1']
    #allocation4 [shape = 's32[1]{0}', space=sflag, size = 0x4, scoped, tag = 'scoped memory for net_forward_packed.1']
    #allocation5 [shape = 'u8[4096]{0}', space=vmem, size = 0x1000, scoped, tag = 'output window, operand 0, single buffered']
    %7 = vsyncpa [#allocation4], 0
    %8 = vsyncpa [#allocation3], 0
    // Predicated region
    $region2: #{net_forward_packed.1} parent=1 // pred_check
      _
    $region3: #{net_forward_packed.1} parent=1 // pred_check_branch
      %10 = sbr.rel (0) target = $region5
    $region4: #{net_forward_packed.1} parent=1 // pred_region
      %s12 = ssub.s32 16, 16
      %13 = vsyncadd [#allocation4], %s12
      %s15 = sshll.u32 %s0, 4
      %s16 = int_to_ptr.vmem [resolvable:$true] %s15
      %18 = dma.vmem_to_smem %s16, 16, [#allocation2], [#allocation4]
    $region5: #{net_forward_packed.1} parent=1 // pred_fallthru
      _
    // Predicated region
    $region6: #{net_forward_packed.1} parent=1 // pred_check
      _
    $region7: #{net_forward_packed.1} parent=1 // pred_check_branch
      %20 = sbr.rel (0) target = $region9
    $region8: #{net_forward_packed.1} parent=1 // pred_region
      _
    $region9: #{net_forward_packed.1} parent=1 // pred_fallthru
      _
    // Predicated region
    $region10: #{net_forward_packed.1} parent=1 // pred_check
      _
    $region11: #{net_forward_packed.1} parent=1 // pred_check_branch
      %22 = sbr.rel (0) target = $region13
    $region12: #{net_forward_packed.1} parent=1 // pred_region
      %23 = dma.done [#allocation4], 16
    $region13: #{net_forward_packed.1} parent=1 // pred_fallthru
      _
    %24 = sfence
    %s25 = sld [smem:[#allocation2]]
    %s26 = sld [smem:[#allocation2 + $0x1]]
    %s27 = sld [smem:[#allocation2 + $0x2]]
    %s28 = sld [smem:[#allocation2 + $0x3]]
    %s29 = sld [smem:[#allocation2 + $0x4]]
    %s30 = sld [smem:[#allocation2 + $0x5]]
    %s31 = sld [smem:[#allocation2 + $0x6]]
    %s32 = sld [smem:[#allocation2 + $0x7]]
    %s33 = sld [smem:[#allocation2 + $0x8]]
    %s34 = sld [smem:[#allocation2 + $0x9]]
    %s35 = sld [smem:[#allocation2 + $0xa]]
    %s36 = sld [smem:[#allocation2 + $0xb]]
    %s37 = sld [smem:[#allocation2 + $0xc]]
    %s38 = sld [smem:[#allocation2 + $0xd]]
    %s39 = sld [smem:[#allocation2 + $0xe]]
    %s40 = sld [smem:[#allocation2 + $0xf]]
    %s41 = sld [smem:[#allocation2 + $0x10]]
    %s42 = sld [smem:[#allocation2 + $0x11]]
    %s43 = sld [smem:[#allocation2 + $0x12]]
    %s44 = sld [smem:[#allocation2 + $0x13]]
    %s45 = sld [smem:[#allocation2 + $0x14]]
    %s46 = sld [smem:[#allocation2 + $0x15]]
    %s47 = sld [smem:[#allocation2 + $0x16]]
    %s48 = sld [smem:[#allocation2 + $0x17]]
    %s49 = sld [smem:[#allocation2 + $0x18]]
    %s50 = sld [smem:[#allocation2 + $0x19]]
    %s51 = sld [smem:[#allocation2 + $0x1a]]
    %s52 = sld [smem:[#allocation2 + $0x1b]]
    %s53 = sld [smem:[#allocation2 + $0x1c]]
    %s54 = sld [smem:[#allocation2 + $0x1d]]
    %s55 = sld [smem:[#allocation2 + $0x1e]]
    %s56 = sld [smem:[#allocation2 + $0x1f]]
    %s57 = sld [smem:[#allocation2 + $0x20]]
    %s58 = sld [smem:[#allocation2 + $0x21]]
    %s59 = sld [smem:[#allocation2 + $0x22]]
    %s60 = sld [smem:[#allocation2 + $0x23]]
    %s61 = sld [smem:[#allocation2 + $0x24]]
    %s62 = sld [smem:[#allocation2 + $0x25]]
    %s63 = sld [smem:[#allocation2 + $0x26]]
    %s64 = sld [smem:[#allocation2 + $0x27]]
    %s65 = sld [smem:[#allocation2 + $0x28]]
    %v66 = vld [vmem:[%s1] sm:$0xff]
    %v67 = vstv %s65
    %v68 = vstv %s25
    %v69 = vmul.f32 %v68, %v66
    %v70 = vstv %s45
    %v71 = vadd.f32 %v69, %v70
    %v72 = vmax.f32 %v71, 0.0
    %v73 = vadd.f32 %v67, %v72
    %v74 = vstv %s26
    %v75 = vmul.f32 %v74, %v66
    %v76 = vstv %s46
    %v77 = vadd.f32 %v75, %v76
    %v78 = vmax.f32 %v77, 0.0
    %v79 = vadd.f32 %v73, %v78
    %v80 = vstv %s27
    %v81 = vmul.f32 %v80, %v66
    %v82 = vstv %s47
    %v83 = vadd.f32 %v81, %v82
    %v84 = vmax.f32 %v83, 0.0
    %v85 = vadd.f32 %v79, %v84
    %v86 = vstv %s28
    %v87 = vmul.f32 %v86, %v66
    %v88 = vstv %s48
    %v89 = vadd.f32 %v87, %v88
    %v90 = vmax.f32 %v89, 0.0
    %v91 = vadd.f32 %v85, %v90
    %v92 = vstv %s29
    %v93 = vmul.f32 %v92, %v66
    %v94 = vstv %s49
    %v95 = vadd.f32 %v93, %v94
    %v96 = vmax.f32 %v95, 0.0
    %v97 = vadd.f32 %v91, %v96
    %v98 = vstv %s30
    %v99 = vmul.f32 %v98, %v66
    %v100 = vstv %s50
    %v101 = vadd.f32 %v99, %v100
    %v102 = vmax.f32 %v101, 0.0
    %v103 = vadd.f32 %v97, %v102
    %v104 = vstv %s31
    %v105 = vmul.f32 %v104, %v66
    %v106 = vstv %s51
    %v107 = vadd.f32 %v105, %v106
    %v108 = vmax.f32 %v107, 0.0
    %v109 = vadd.f32 %v103, %v108
    %v110 = vstv %s32
    %v111 = vmul.f32 %v110, %v66
    %v112 = vstv %s52
    %v113 = vadd.f32 %v111, %v112
    %v114 = vmax.f32 %v113, 0.0
    %v115 = vadd.f32 %v109, %v114
    %v116 = vstv %s33
    %v117 = vmul.f32 %v116, %v66
    %v118 = vstv %s53
    %v119 = vadd.f32 %v117, %v118
    %v120 = vmax.f32 %v119, 0.0
    %v121 = vadd.f32 %v115, %v120
    %v122 = vstv %s34
    %v123 = vmul.f32 %v122, %v66
    %v124 = vstv %s54
    %v125 = vadd.f32 %v123, %v124
    %v126 = vmax.f32 %v125, 0.0
    %v127 = vadd.f32 %v121, %v126
    %v128 = vstv %s35
    %v129 = vmul.f32 %v128, %v66
    %v130 = vstv %s55
    %v131 = vadd.f32 %v129, %v130
    %v132 = vmax.f32 %v131, 0.0
    %v133 = vadd.f32 %v127, %v132
    %v134 = vstv %s36
    %v135 = vmul.f32 %v134, %v66
    %v136 = vstv %s56
    %v137 = vadd.f32 %v135, %v136
    %v138 = vmax.f32 %v137, 0.0
    %v139 = vsub.f32 %v133, %v138
    %v140 = vstv %s37
    %v141 = vmul.f32 %v140, %v66
    %v142 = vstv %s57
    %v143 = vadd.f32 %v141, %v142
    %v144 = vmax.f32 %v143, 0.0
    %v145 = vsub.f32 %v139, %v144
    %v146 = vstv %s38
    %v147 = vmul.f32 %v146, %v66
    %v148 = vstv %s58
    %v149 = vadd.f32 %v147, %v148
    %v150 = vmax.f32 %v149, 0.0
    %v151 = vsub.f32 %v145, %v150
    %v152 = vstv %s39
    %v153 = vmul.f32 %v152, %v66
    %v154 = vstv %s59
    %v155 = vadd.f32 %v153, %v154
    %v156 = vmax.f32 %v155, 0.0
    %v157 = vsub.f32 %v151, %v156
    %v158 = vstv %s40
    %v159 = vmul.f32 %v158, %v66
    %v160 = vstv %s60
    %v161 = vadd.f32 %v159, %v160
    %v162 = vmax.f32 %v161, 0.0
    %v163 = vsub.f32 %v157, %v162
    %v164 = vstv %s41
    %v165 = vmul.f32 %v164, %v66
    %v166 = vstv %s61
    %v167 = vadd.f32 %v165, %v166
    %v168 = vmax.f32 %v167, 0.0
    %v169 = vsub.f32 %v163, %v168
    %v170 = vstv %s42
    %v171 = vmul.f32 %v170, %v66
    %v172 = vstv %s62
    %v173 = vadd.f32 %v171, %v172
    %v174 = vmax.f32 %v173, 0.0
    %v175 = vsub.f32 %v169, %v174
    %v176 = vstv %s43
    %v177 = vmul.f32 %v176, %v66
    %v178 = vstv %s63
    %v179 = vadd.f32 %v177, %v178
    %v180 = vmax.f32 %v179, 0.0
    %v181 = vsub.f32 %v175, %v180
    %v182 = vstv %s44
    %v183 = vmul.f32 %v182, %v66
    %v184 = vstv %s64
    %v185 = vadd.f32 %v183, %v184
    %v186 = vmax.f32 %v185, 0.0
    %v187 = vsub.f32 %v181, %v186
    %188 = vst [vmem:[#allocation5] sm:$0xff] %v187
    // Predicated region
    $region14: #{net_forward_packed.1} parent=1 // pred_check
      _
    $region15: #{net_forward_packed.1} parent=1 // pred_check_branch
      %190 = sbr.rel (0) target = $region17
    $region16: #{net_forward_packed.1} parent=1 // pred_region
      %s192 = ssub.s32 128, 128
      %193 = vsyncadd [#allocation3], %s192
      %s195 = sshll.u32 [#allocation5], 4
      %s196 = int_to_ptr.vmem [resolvable:$true] %s195
      %198 = dma.vmem_to_hbm [thread:$0]  %s196, 128, %s2, [#allocation3]
    $region17: #{net_forward_packed.1} parent=1 // pred_fallthru
      _
    // Predicated region
    $region18: #{net_forward_packed.1} parent=1 // pred_check
      _
    $region19: #{net_forward_packed.1} parent=1 // pred_check_branch
      %200 = sbr.rel (0) target = $region21
    $region20: #{net_forward_packed.1} parent=1 // pred_region
      %201 = dma.done [#allocation3], 128
    $region21: #{net_forward_packed.1} parent=1 // pred_fallthru
      _
    %202 = vsyncpa [#allocation3], 1
    %203 = vsyncpa [#allocation4], 1

</llo_original>
